<compile_context>
chip_gen: v7x
topology: tpu7x:2x2x1
jax: 0.10.0
libtpu: 0.0.40
codegen_flags: <defaults>
</compile_context>

<pallas_src>
import jax
import jax.numpy as jnp
from jax import lax
from jax.experimental import pallas as pl
from jax.experimental.pallas import tpu as pltpu


def relation_kernel(rel_ref, loss_ref):
    H = rel_ref.shape[-1]

    # Lane iota reused for both the feature weights and the identity row.
    col = lax.broadcasted_iota(jnp.int32, (1, H), 1)
    # embedding_similarity concatenates [(s)^2, (x)^2, (x)^2, (y)^2, (y)^2]
    # along features and row-sums: equivalent to a weighted row-sum of
    # (head - tail)^2 with weight 1 on the first H/2 features and weight 2 on
    # the last H/2 features.
    w = jnp.where(col < H // 2, 1.0, 2.0).astype(jnp.float32)            # (1, H)
    # identity = cat(ones(3H/4), zeros(H/4)).unsqueeze(0), broadcast over rows.
    ident = jnp.where(col < H - H // 4, 1.0, 0.0).astype(jnp.float32)    # (1, H)

    BEFORE, AFTER, EQUAL, CAUSE, CAUSEDBY, COSUPER, SUBSUPER, SUPERSUB = range(8)

    def rel(i):
        # Slice at point of use: keeps only the tables needed per pair live.
        return rel_ref[i].astype(jnp.float32)                            # (H, H)

    def constraints():
        # sub-relation constraint
        yield rel(CAUSE), rel(BEFORE)
        # inverse constraints (tail = identity row, broadcast over rows)
        yield rel(SUBSUPER) * rel(SUPERSUB), ident
        yield rel(BEFORE) * rel(AFTER), ident
        yield rel(CAUSE) * rel(CAUSEDBY), ident
        # transitive constraints: r*r vs r
        for i in (SUBSUPER, SUPERSUB, COSUPER, BEFORE, AFTER, EQUAL):
            x = rel(i)
            yield x * x, x

    # Fused: every constraint is reduced to its (H, 1) weighted squared-norm
    # column immediately; the [10, H, H] diff stack is never materialized.
    cols = []
    for head, tail in constraints():
        d = head - tail
        cols.append(jnp.sum(d * d * w, axis=-1, keepdims=True))          # (H, 1)

    fro = jnp.sqrt(jnp.concatenate(cols, axis=-1))                       # (H, 10)

    mx = jnp.max(fro, axis=0, keepdims=True)                             # (1, 10)
    mn = jnp.min(fro, axis=0, keepdims=True)                             # (1, 10)
    mean_fro = jnp.mean(fro, axis=0, keepdims=True)                      # (1, 10)

    # mean((mx - fro) / (mx - mn)) == (mx - mean(fro)) / (mx - mn).
    # Exact divide (not approx reciprocal) to stay numerically faithful.
    sims = (mx - mean_fro) / (mx - mn)                                   # (1, 10)
    logs = jnp.log(sims + jnp.float32(5e-05))                            # (1, 10)

    # loss = 0.5*loss_sub + 0.5*loss_inver + 0.5*loss_trans == -0.5 * sum(logs)
    total = jnp.sum(logs, axis=-1, keepdims=True)                        # (1, 1)
    loss_ref[...] = jax.nn.sigmoid(-0.5 * total)


def relation_forward(relations):
    """relations: [8, H, H] stacked embedding tables in the order
    (before, after, equal, cause, causedby, cosuper, subsuper, supersub)."""
    loss = pl.pallas_call(
        relation_kernel,
        out_shape=jax.ShapeDtypeStruct((1, 1), jnp.float32),
        in_specs=[pl.BlockSpec(memory_space=pltpu.MemorySpace.VMEM)],
        # (1,1) scalar stays a VMEM output: the single masked vst is noise at
        # this size and avoids a vector->scalar extraction for an SMEM store.
        out_specs=pl.BlockSpec(memory_space=pltpu.MemorySpace.VMEM),
    )(relations)
    # torch.stack((before, ..., supersub), dim=0) is exactly the input stack:
    # return it from the wrapper instead of DMA-ing it through the kernel.
    return loss[0, 0], relations


def _reference_loss(relations):
    """Straightforward JAX port of the PyTorch forward (for verification)."""
    H = relations.shape[-1]
    ns, nb = H // 2, H // 4
    ident = jnp.concatenate(
        [jnp.ones((H - nb,), jnp.float32), jnp.zeros((nb,), jnp.float32)]
    )[None, :]

    def sim(head, tail):
        d = head - tail
        s = jnp.concatenate(
            [d[:, :ns] ** 2, d[:, ns:-nb] ** 2, d[:, ns:-nb] ** 2,
             d[:, -nb:] ** 2, d[:, -nb:] ** 2],
            axis=1,
        )
        fro = jnp.sqrt(jnp.sum(s, axis=1))
        return jnp.mean((jnp.max(fro) - fro) / (jnp.max(fro) - jnp.min(fro)))

    b, a, e, c, cb, cs, ss, sp = [relations[i] for i in range(8)]
    bias = 5e-05
    loss_sub = -jnp.log(sim(c, b) + bias)
    loss_inv = (-jnp.log(sim(ss * sp, ident) + bias)
                - jnp.log(sim(b * a, ident) + bias)
                - jnp.log(sim(c * cb, ident) + bias))
    loss_tr = sum(-jnp.log(sim(x * x, x) + bias) for x in (ss, sp, cs, b, a, e))
    return jax.nn.sigmoid(0.5 * loss_sub + 0.5 * loss_inv + 0.5 * loss_tr)


if __name__ == "__main__":
    H = 32  # hidden_size; must be divisible by 4
    key = jax.random.PRNGKey(0)

    # nn.Embedding(H, H) default init is N(0, 1); indexing rows 0..H-1 returns
    # the full weight table, so each relation embedding is just its [H, H]
    # weight matrix. Stack order matches the torch module.
    relations = jax.random.normal(key, (8, H, H), dtype=jnp.float32)

    loss, relation_embedding = relation_forward(relations)
    jax.block_until_ready((loss, relation_embedding))

    assert loss.shape == ()
    assert relation_embedding.shape == (8, H, H)

    ref = _reference_loss(relations)
    assert jnp.isfinite(loss)
    assert jnp.allclose(loss, ref, rtol=1e-4, atol=1e-4), (loss, ref)

    print("KERNEL_OK")
</pallas_src>

<mosaic_0001>
module attributes {stable_mosaic.version = 11 : i64} {
  func.func @relation_kernel(%arg0: memref<8x32x32xf32, #tpu.memory_space<vmem>>, %arg1: memref<1x1xf32, #tpu.memory_space<vmem>>) attributes {dimension_semantics = [], scalar_prefetch = 0 : i64, scratch_operands = 0 : i64, tpu.core_type = #tpu.core_type<tc>} {
    %0 = tpu.iota {dimensions = array<i32: 1>} : vector<1x32xi32>
    %c16_i32 = arith.constant 16 : i32
    %1 = vector.broadcast %c16_i32 : i32 to vector<1x32xi32>
    %2 = arith.cmpi slt, %0, %1 : vector<1x32xi32>
    %cst = arith.constant 1.000000e+00 : f32
    %cst_0 = arith.constant 2.000000e+00 : f32
    %3 = vector.broadcast %cst : f32 to vector<1x32xf32>
    %4 = vector.broadcast %cst_0 : f32 to vector<1x32xf32>
    %5 = arith.select %2, %3, %4 : vector<1x32xi1>, vector<1x32xf32>
    %c24_i32 = arith.constant 24 : i32
    %6 = vector.broadcast %c24_i32 : i32 to vector<1x32xi32>
    %7 = arith.cmpi slt, %0, %6 : vector<1x32xi32>
    %cst_1 = arith.constant 1.000000e+00 : f32
    %cst_2 = arith.constant 0.000000e+00 : f32
    %8 = vector.broadcast %cst_1 : f32 to vector<1x32xf32>
    %9 = vector.broadcast %cst_2 : f32 to vector<1x32xf32>
    %10 = arith.select %7, %8, %9 : vector<1x32xi1>, vector<1x32xf32>
    %c3 = arith.constant 3 : index
    %c0 = arith.constant 0 : index
    %c0_3 = arith.constant 0 : index
    %11 = vector.load %arg0[%c3, %c0, %c0_3] : memref<8x32x32xf32, #tpu.memory_space<vmem>>, vector<1x32x32xf32>
    %12 = vector.shape_cast %11 : vector<1x32x32xf32> to vector<32x32xf32>
    %c0_4 = arith.constant 0 : index
    %c0_5 = arith.constant 0 : index
    %c0_6 = arith.constant 0 : index
    %13 = vector.load %arg0[%c0_4, %c0_5, %c0_6] : memref<8x32x32xf32, #tpu.memory_space<vmem>>, vector<1x32x32xf32>
    %14 = vector.shape_cast %13 : vector<1x32x32xf32> to vector<32x32xf32>
    %15 = arith.subf %12, %14 : vector<32x32xf32>
    %16 = arith.mulf %15, %15 : vector<32x32xf32>
    %17 = vector.broadcast %5 : vector<1x32xf32> to vector<32x32xf32>
    %18 = arith.mulf %16, %17 : vector<32x32xf32>
    %cst_7 = arith.constant dense<0.000000e+00> : vector<32xf32>
    %19 = vector.multi_reduction <add>, %18, %cst_7 [1] : vector<32x32xf32> to vector<32xf32>
    %20 = vector.shape_cast %19 : vector<32xf32> to vector<32x1xf32>
    %c6 = arith.constant 6 : index
    %c0_8 = arith.constant 0 : index
    %c0_9 = arith.constant 0 : index
    %21 = vector.load %arg0[%c6, %c0_8, %c0_9] : memref<8x32x32xf32, #tpu.memory_space<vmem>>, vector<1x32x32xf32>
    %22 = vector.shape_cast %21 : vector<1x32x32xf32> to vector<32x32xf32>
    %c7 = arith.constant 7 : index
    %c0_10 = arith.constant 0 : index
    %c0_11 = arith.constant 0 : index
    %23 = vector.load %arg0[%c7, %c0_10, %c0_11] : memref<8x32x32xf32, #tpu.memory_space<vmem>>, vector<1x32x32xf32>
    %24 = vector.shape_cast %23 : vector<1x32x32xf32> to vector<32x32xf32>
    %25 = arith.mulf %22, %24 : vector<32x32xf32>
    %26 = vector.broadcast %10 : vector<1x32xf32> to vector<32x32xf32>
    %27 = arith.subf %25, %26 : vector<32x32xf32>
    %28 = arith.mulf %27, %27 : vector<32x32xf32>
    %29 = vector.broadcast %5 : vector<1x32xf32> to vector<32x32xf32>
    %30 = arith.mulf %28, %29 : vector<32x32xf32>
    %cst_12 = arith.constant dense<0.000000e+00> : vector<32xf32>
    %31 = vector.multi_reduction <add>, %30, %cst_12 [1] : vector<32x32xf32> to vector<32xf32>
    %32 = vector.shape_cast %31 : vector<32xf32> to vector<32x1xf32>
    %c0_13 = arith.constant 0 : index
    %c0_14 = arith.constant 0 : index
    %c0_15 = arith.constant 0 : index
    %33 = vector.load %arg0[%c0_13, %c0_14, %c0_15] : memref<8x32x32xf32, #tpu.memory_space<vmem>>, vector<1x32x32xf32>
    %34 = vector.shape_cast %33 : vector<1x32x32xf32> to vector<32x32xf32>
    %c1 = arith.constant 1 : index
    %c0_16 = arith.constant 0 : index
    %c0_17 = arith.constant 0 : index
    %35 = vector.load %arg0[%c1, %c0_16, %c0_17] : memref<8x32x32xf32, #tpu.memory_space<vmem>>, vector<1x32x32xf32>
    %36 = vector.shape_cast %35 : vector<1x32x32xf32> to vector<32x32xf32>
    %37 = arith.mulf %34, %36 : vector<32x32xf32>
    %38 = vector.broadcast %10 : vector<1x32xf32> to vector<32x32xf32>
    %39 = arith.subf %37, %38 : vector<32x32xf32>
    %40 = arith.mulf %39, %39 : vector<32x32xf32>
    %41 = vector.broadcast %5 : vector<1x32xf32> to vector<32x32xf32>
    %42 = arith.mulf %40, %41 : vector<32x32xf32>
    %cst_18 = arith.constant dense<0.000000e+00> : vector<32xf32>
    %43 = vector.multi_reduction <add>, %42, %cst_18 [1] : vector<32x32xf32> to vector<32xf32>
    %44 = vector.shape_cast %43 : vector<32xf32> to vector<32x1xf32>
    %c3_19 = arith.constant 3 : index
    %c0_20 = arith.constant 0 : index
    %c0_21 = arith.constant 0 : index
    %45 = vector.load %arg0[%c3_19, %c0_20, %c0_21] : memref<8x32x32xf32, #tpu.memory_space<vmem>>, vector<1x32x32xf32>
    %46 = vector.shape_cast %45 : vector<1x32x32xf32> to vector<32x32xf32>
    %c4 = arith.constant 4 : index
    %c0_22 = arith.constant 0 : index
    %c0_23 = arith.constant 0 : index
    %47 = vector.load %arg0[%c4, %c0_22, %c0_23] : memref<8x32x32xf32, #tpu.memory_space<vmem>>, vector<1x32x32xf32>
    %48 = vector.shape_cast %47 : vector<1x32x32xf32> to vector<32x32xf32>
    %49 = arith.mulf %46, %48 : vector<32x32xf32>
    %50 = vector.broadcast %10 : vector<1x32xf32> to vector<32x32xf32>
    %51 = arith.subf %49, %50 : vector<32x32xf32>
    %52 = arith.mulf %51, %51 : vector<32x32xf32>
    %53 = vector.broadcast %5 : vector<1x32xf32> to vector<32x32xf32>
    %54 = arith.mulf %52, %53 : vector<32x32xf32>
    %cst_24 = arith.constant dense<0.000000e+00> : vector<32xf32>
    %55 = vector.multi_reduction <add>, %54, %cst_24 [1] : vector<32x32xf32> to vector<32xf32>
    %56 = vector.shape_cast %55 : vector<32xf32> to vector<32x1xf32>
    %c6_25 = arith.constant 6 : index
    %c0_26 = arith.constant 0 : index
    %c0_27 = arith.constant 0 : index
    %57 = vector.load %arg0[%c6_25, %c0_26, %c0_27] : memref<8x32x32xf32, #tpu.memory_space<vmem>>, vector<1x32x32xf32>
    %58 = vector.shape_cast %57 : vector<1x32x32xf32> to vector<32x32xf32>
    %59 = arith.mulf %58, %58 : vector<32x32xf32>
    %60 = arith.subf %59, %58 : vector<32x32xf32>
    %61 = arith.mulf %60, %60 : vector<32x32xf32>
    %62 = vector.broadcast %5 : vector<1x32xf32> to vector<32x32xf32>
    %63 = arith.mulf %61, %62 : vector<32x32xf32>
    %cst_28 = arith.constant dense<0.000000e+00> : vector<32xf32>
    %64 = vector.multi_reduction <add>, %63, %cst_28 [1] : vector<32x32xf32> to vector<32xf32>
    %65 = vector.shape_cast %64 : vector<32xf32> to vector<32x1xf32>
    %c7_29 = arith.constant 7 : index
    %c0_30 = arith.constant 0 : index
    %c0_31 = arith.constant 0 : index
    %66 = vector.load %arg0[%c7_29, %c0_30, %c0_31] : memref<8x32x32xf32, #tpu.memory_space<vmem>>, vector<1x32x32xf32>
    %67 = vector.shape_cast %66 : vector<1x32x32xf32> to vector<32x32xf32>
    %68 = arith.mulf %67, %67 : vector<32x32xf32>
    %69 = arith.subf %68, %67 : vector<32x32xf32>
    %70 = arith.mulf %69, %69 : vector<32x32xf32>
    %71 = vector.broadcast %5 : vector<1x32xf32> to vector<32x32xf32>
    %72 = arith.mulf %70, %71 : vector<32x32xf32>
    %cst_32 = arith.constant dense<0.000000e+00> : vector<32xf32>
    %73 = vector.multi_reduction <add>, %72, %cst_32 [1] : vector<32x32xf32> to vector<32xf32>
    %74 = vector.shape_cast %73 : vector<32xf32> to vector<32x1xf32>
    %c5 = arith.constant 5 : index
    %c0_33 = arith.constant 0 : index
    %c0_34 = arith.constant 0 : index
    %75 = vector.load %arg0[%c5, %c0_33, %c0_34] : memref<8x32x32xf32, #tpu.memory_space<vmem>>, vector<1x32x32xf32>
    %76 = vector.shape_cast %75 : vector<1x32x32xf32> to vector<32x32xf32>
    %77 = arith.mulf %76, %76 : vector<32x32xf32>
    %78 = arith.subf %77, %76 : vector<32x32xf32>
    %79 = arith.mulf %78, %78 : vector<32x32xf32>
    %80 = vector.broadcast %5 : vector<1x32xf32> to vector<32x32xf32>
    %81 = arith.mulf %79, %80 : vector<32x32xf32>
    %cst_35 = arith.constant dense<0.000000e+00> : vector<32xf32>
    %82 = vector.multi_reduction <add>, %81, %cst_35 [1] : vector<32x32xf32> to vector<32xf32>
    %83 = vector.shape_cast %82 : vector<32xf32> to vector<32x1xf32>
    %c0_36 = arith.constant 0 : index
    %c0_37 = arith.constant 0 : index
    %c0_38 = arith.constant 0 : index
    %84 = vector.load %arg0[%c0_36, %c0_37, %c0_38] : memref<8x32x32xf32, #tpu.memory_space<vmem>>, vector<1x32x32xf32>
    %85 = vector.shape_cast %84 : vector<1x32x32xf32> to vector<32x32xf32>
    %86 = arith.mulf %85, %85 : vector<32x32xf32>
    %87 = arith.subf %86, %85 : vector<32x32xf32>
    %88 = arith.mulf %87, %87 : vector<32x32xf32>
    %89 = vector.broadcast %5 : vector<1x32xf32> to vector<32x32xf32>
    %90 = arith.mulf %88, %89 : vector<32x32xf32>
    %cst_39 = arith.constant dense<0.000000e+00> : vector<32xf32>
    %91 = vector.multi_reduction <add>, %90, %cst_39 [1] : vector<32x32xf32> to vector<32xf32>
    %92 = vector.shape_cast %91 : vector<32xf32> to vector<32x1xf32>
    %c1_40 = arith.constant 1 : index
    %c0_41 = arith.constant 0 : index
    %c0_42 = arith.constant 0 : index
    %93 = vector.load %arg0[%c1_40, %c0_41, %c0_42] : memref<8x32x32xf32, #tpu.memory_space<vmem>>, vector<1x32x32xf32>
    %94 = vector.shape_cast %93 : vector<1x32x32xf32> to vector<32x32xf32>
    %95 = arith.mulf %94, %94 : vector<32x32xf32>
    %96 = arith.subf %95, %94 : vector<32x32xf32>
    %97 = arith.mulf %96, %96 : vector<32x32xf32>
    %98 = vector.broadcast %5 : vector<1x32xf32> to vector<32x32xf32>
    %99 = arith.mulf %97, %98 : vector<32x32xf32>
    %cst_43 = arith.constant dense<0.000000e+00> : vector<32xf32>
    %100 = vector.multi_reduction <add>, %99, %cst_43 [1] : vector<32x32xf32> to vector<32xf32>
    %101 = vector.shape_cast %100 : vector<32xf32> to vector<32x1xf32>
    %c2 = arith.constant 2 : index
    %c0_44 = arith.constant 0 : index
    %c0_45 = arith.constant 0 : index
    %102 = vector.load %arg0[%c2, %c0_44, %c0_45] : memref<8x32x32xf32, #tpu.memory_space<vmem>>, vector<1x32x32xf32>
    %103 = vector.shape_cast %102 : vector<1x32x32xf32> to vector<32x32xf32>
    %104 = arith.mulf %103, %103 : vector<32x32xf32>
    %105 = arith.subf %104, %103 : vector<32x32xf32>
    %106 = arith.mulf %105, %105 : vector<32x32xf32>
    %107 = vector.broadcast %5 : vector<1x32xf32> to vector<32x32xf32>
    %108 = arith.mulf %106, %107 : vector<32x32xf32>
    %cst_46 = arith.constant dense<0.000000e+00> : vector<32xf32>
    %109 = vector.multi_reduction <add>, %108, %cst_46 [1] : vector<32x32xf32> to vector<32xf32>
    %110 = vector.shape_cast %109 : vector<32xf32> to vector<32x1xf32>
    %111 = tpu.concatenate %20, %32, %44, %56, %65, %74, %83, %92, %101, %110 in 1 : vector<32x1xf32>, vector<32x1xf32>, vector<32x1xf32>, vector<32x1xf32>, vector<32x1xf32>, vector<32x1xf32>, vector<32x1xf32>, vector<32x1xf32>, vector<32x1xf32>, vector<32x1xf32> -> vector<32x10xf32>
    %112 = math.sqrt %111 : vector<32x10xf32>
    %cst_47 = arith.constant dense<0xFF800000> : vector<10xf32>
    %113 = vector.multi_reduction <maximumf>, %112, %cst_47 [0] : vector<32x10xf32> to vector<10xf32>
    %114 = vector.shape_cast %113 : vector<10xf32> to vector<1x10xf32>
    %cst_48 = arith.constant dense<0x7F800000> : vector<10xf32>
    %115 = vector.multi_reduction <minimumf>, %112, %cst_48 [0] : vector<32x10xf32> to vector<10xf32>
    %116 = vector.shape_cast %115 : vector<10xf32> to vector<1x10xf32>
    %cst_49 = arith.constant dense<0.000000e+00> : vector<10xf32>
    %117 = vector.multi_reduction <add>, %112, %cst_49 [0] : vector<32x10xf32> to vector<10xf32>
    %118 = vector.shape_cast %117 : vector<10xf32> to vector<1x10xf32>
    %cst_50 = arith.constant 3.200000e+01 : f32
    %119 = vector.broadcast %cst_50 : f32 to vector<1x10xf32>
    %120 = arith.divf %118, %119 : vector<1x10xf32>
    %121 = arith.subf %114, %120 : vector<1x10xf32>
    %122 = arith.subf %114, %116 : vector<1x10xf32>
    %123 = arith.divf %121, %122 : vector<1x10xf32>
    %cst_51 = arith.constant 5.000000e-05 : f32
    %124 = vector.broadcast %cst_51 : f32 to vector<1x10xf32>
    %125 = arith.addf %123, %124 : vector<1x10xf32>
    %126 = math.log %125 : vector<1x10xf32>
    %cst_52 = arith.constant dense<0.000000e+00> : vector<1xf32>
    %127 = vector.multi_reduction <add>, %126, %cst_52 [1] : vector<1x10xf32> to vector<1xf32>
    %128 = vector.shape_cast %127 : vector<1xf32> to vector<1x1xf32>
    %cst_53 = arith.constant -5.000000e-01 : f32
    %129 = vector.broadcast %cst_53 : f32 to vector<1x1xf32>
    %130 = arith.mulf %129, %128 : vector<1x1xf32>
    %131 = arith.negf %130 : vector<1x1xf32>
    %132 = math.exp %131 : vector<1x1xf32>
    %cst_54 = arith.constant 1.000000e+00 : f32
    %133 = vector.broadcast %cst_54 : f32 to vector<1x1xf32>
    %134 = arith.addf %133, %132 : vector<1x1xf32>
    %135 = arith.divf %133, %134 : vector<1x1xf32>
    %c0_55 = arith.constant 0 : index
    %c0_56 = arith.constant 0 : index
    %136 = vector.load %arg1[%c0_55, %c0_56] : memref<1x1xf32, #tpu.memory_space<vmem>>, vector<1x1xf32>
    tpu.vector_store %arg1[%c0_55, %c0_56], %135 {strides = array<i32>} : memref<1x1xf32, #tpu.memory_space<vmem>>, vector<1x1xf32>,
    return
  }
}

</mosaic_0001>

<llo_original>
// kernel: tpu_custom_call.1
$region0: #{tpu_custom_call.1}
  #allocation0 [shape = 'u32[]', space=smem, size = 0x4, offset = 0x4, fixed_abs, tag = 'smem constant byte address 0x4 - core index']
  #allocation1 [shape = 'u32[144,128]{1,0:T(1,128)}', space=vmem, size = 0x12000, scoped, tag = 'internal scratch']
  %s0 = inlined_call_operand.hbm [shape: f32[8,32,32], index: 0, kind: input, shape index: {}]
  %s1 = inlined_call_operand.hbm [shape: f32[1,1], index: 1, kind: output, shape index: {}]
  %s2 = sld [smem:[#allocation0]]
  $region18: #{tpu_custom_call.1} parent=0
    _
  %s4 = ssub.s32 1, %s2
  %s5 = scalar_select 0, %s4, %s2
  $region1: #{tpu_custom_call.1} parent=0
    #allocation2 [shape = 'u8[131072]{0}', space=vmem, size = 0x20000, scoped, tag = 'input window, operand 0, single buffered']
    #allocation3 [shape = 's32[1]{0}', space=sflag, size = 0x4, scoped, tag = 'scoped memory for tpu_custom_call.1']
    #allocation4 [shape = 's32[1]{0}', space=sflag, size = 0x4, scoped, tag = 'scoped memory for tpu_custom_call.1']
    #allocation5 [shape = 'u8[512]{0}', space=vmem, size = 0x400, scoped, tag = 'output window, operand 0, single buffered']
    %6 = vsyncpa [#allocation3], 0
    %7 = vsyncpa [#allocation4], 0
    // Predicated region
    $region2: #{tpu_custom_call.1} parent=1 // pred_check
      _
    $region3: #{tpu_custom_call.1} parent=1 // pred_check_branch
      %9 = sbr.rel (0) target = $region5
    $region4: #{tpu_custom_call.1} parent=1 // pred_region
      %s11 = ssub.s32 4096, 4096
      %12 = vsyncadd [#allocation3], %s11
      %s13 = sshll.u32 [#allocation2], 4
      %s14 = int_to_ptr.vmem [resolvable:$true] %s13
      %19 = dma.hbm_to_vmem [thread:$0]  %s0, 4096, %s14, [#allocation3], 128, 128, 8
    $region5: #{tpu_custom_call.1} parent=1 // pred_fallthru
      _
    // Predicated region
    $region6: #{tpu_custom_call.1} parent=1 // pred_check
      _
    $region7: #{tpu_custom_call.1} parent=1 // pred_check_branch
      %21 = sbr.rel (0) target = $region9
    $region8: #{tpu_custom_call.1} parent=1 // pred_region
      %22 = dma.done [#allocation3], 4096
    $region9: #{tpu_custom_call.1} parent=1 // pred_fallthru
      _
    %v23 = vlaneseq
    %v24 = vand.u32 %v23, 127
    %vm25 = vcmp.lt.s32.totalorder %v24, 16
    %v26 = vsel %vm25, 1.0, 2.0
    %vm27 = vcmp.lt.s32.totalorder %v24, 24
    %v28 = vsel %vm27, 1.0, 0.0
    %s29 = scalar_lea.vmem [#allocation2], 96
    %v30 = vld [vmem:[%s29] sm:$0xff]
    %v31 = vld [vmem:[%s29 + $0x8] sm:$0xff]
    %v32 = vld [vmem:[%s29 + $0x10] sm:$0xff]
    %v33 = vld [vmem:[%s29 + $0x18] sm:$0xff]
    %v34 = vld [vmem:[#allocation2] sm:$0xff]
    %v35 = vld [vmem:[#allocation2 + $0x8] sm:$0xff]
    %v36 = vld [vmem:[#allocation2 + $0x10] sm:$0xff]
    %v37 = vld [vmem:[#allocation2 + $0x18] sm:$0xff]
    %v38 = vsub.f32 %v30, %v34
    %v39 = vsub.f32 %v31, %v35
    %v40 = vsub.f32 %v32, %v36
    %v41 = vsub.f32 %v33, %v37
    %v42 = vmul.f32 %v38, %v38
    %v43 = vmul.f32 %v39, %v39
    %v44 = vmul.f32 %v40, %v40
    %v45 = vmul.f32 %v41, %v41
    %v46 = vmul.f32 %v42, %v26
    %v47 = vmul.f32 %v43, %v26
    %v48 = vmul.f32 %v44, %v26
    %v49 = vmul.f32 %v45, %v26
    %vm50 = vcmask 261120
    %v51 = vsel %vm50, %v46, 0.0
    %52 = vadd.xlane.f32.xlu0 %v51
    %v53 = vpop.xlane.xlu0 %52
    %v54 = vsel %vm50, %v47, 0.0
    %55 = vadd.xlane.f32.xlu0 %v54
    %v56 = vpop.xlane.xlu0 %55
    %v57 = vsel %vm50, %v48, 0.0
    %58 = vadd.xlane.f32.xlu0 %v57
    %v59 = vpop.xlane.xlu0 %58
    %v60 = vsel %vm50, %v49, 0.0
    %61 = vadd.xlane.f32.xlu0 %v60
    %v62 = vpop.xlane.xlu0 %61
    %s63 = scalar_lea.vmem [#allocation2], 192
    %v64 = vld [vmem:[%s63] sm:$0xff]
    %v65 = vld [vmem:[%s63 + $0x8] sm:$0xff]
    %v66 = vld [vmem:[%s63 + $0x10] sm:$0xff]
    %v67 = vld [vmem:[%s63 + $0x18] sm:$0xff]
    %s68 = scalar_lea.vmem [#allocation2], 224
    %v69 = vld [vmem:[%s68] sm:$0xff]
    %v70 = vld [vmem:[%s68 + $0x8] sm:$0xff]
    %v71 = vld [vmem:[%s68 + $0x10] sm:$0xff]
    %v72 = vld [vmem:[%s68 + $0x18] sm:$0xff]
    %v73 = vmul.f32 %v64, %v69
    %v74 = vmul.f32 %v65, %v70
    %v75 = vmul.f32 %v66, %v71
    %v76 = vmul.f32 %v67, %v72
    %v77 = vsub.f32 %v73, %v28
    %v78 = vsub.f32 %v74, %v28
    %v79 = vsub.f32 %v75, %v28
    %v80 = vsub.f32 %v76, %v28
    %v81 = vmul.f32 %v77, %v77
    %v82 = vmul.f32 %v78, %v78
    %v83 = vmul.f32 %v79, %v79
    %v84 = vmul.f32 %v80, %v80
    %v85 = vmul.f32 %v81, %v26
    %v86 = vmul.f32 %v82, %v26
    %v87 = vmul.f32 %v83, %v26
    %v88 = vmul.f32 %v84, %v26
    %v89 = vsel %vm50, %v85, 0.0
    %90 = vadd.xlane.f32.xlu0 %v89
    %v91 = vpop.xlane.xlu0 %90
    %v92 = vsel %vm50, %v86, 0.0
    %93 = vadd.xlane.f32.xlu0 %v92
    %v94 = vpop.xlane.xlu0 %93
    %v95 = vsel %vm50, %v87, 0.0
    %96 = vadd.xlane.f32.xlu0 %v95
    %v97 = vpop.xlane.xlu0 %96
    %v98 = vsel %vm50, %v88, 0.0
    %99 = vadd.xlane.f32.xlu0 %v98
    %v100 = vpop.xlane.xlu0 %99
    %s101 = scalar_lea.vmem [#allocation2], 32
    %v102 = vld [vmem:[%s101] sm:$0xff]
    %v103 = vld [vmem:[%s101 + $0x8] sm:$0xff]
    %v104 = vld [vmem:[%s101 + $0x10] sm:$0xff]
    %v105 = vld [vmem:[%s101 + $0x18] sm:$0xff]
    %v106 = vmul.f32 %v34, %v102
    %v107 = vmul.f32 %v35, %v103
    %v108 = vmul.f32 %v36, %v104
    %v109 = vmul.f32 %v37, %v105
    %v110 = vsub.f32 %v106, %v28
    %v111 = vsub.f32 %v107, %v28
    %v112 = vsub.f32 %v108, %v28
    %v113 = vsub.f32 %v109, %v28
    %v114 = vmul.f32 %v110, %v110
    %v115 = vmul.f32 %v111, %v111
    %v116 = vmul.f32 %v112, %v112
    %v117 = vmul.f32 %v113, %v113
    %v118 = vmul.f32 %v114, %v26
    %v119 = vmul.f32 %v115, %v26
    %v120 = vmul.f32 %v116, %v26
    %v121 = vmul.f32 %v117, %v26
    %v122 = vsel %vm50, %v118, 0.0
    %123 = vadd.xlane.f32.xlu0 %v122
    %v124 = vpop.xlane.xlu0 %123
    %v125 = vsel %vm50, %v119, 0.0
    %126 = vadd.xlane.f32.xlu0 %v125
    %v127 = vpop.xlane.xlu0 %126
    %v128 = vsel %vm50, %v120, 0.0
    %129 = vadd.xlane.f32.xlu0 %v128
    %v130 = vpop.xlane.xlu0 %129
    %v131 = vsel %vm50, %v121, 0.0
    %132 = vadd.xlane.f32.xlu0 %v131
    %v133 = vpop.xlane.xlu0 %132
    %s134 = scalar_lea.vmem [#allocation2], 128
    %v135 = vld [vmem:[%s134] sm:$0xff]
    %v136 = vld [vmem:[%s134 + $0x8] sm:$0xff]
    %v137 = vld [vmem:[%s134 + $0x10] sm:$0xff]
    %v138 = vld [vmem:[%s134 + $0x18] sm:$0xff]
    %v139 = vmul.f32 %v30, %v135
    %v140 = vmul.f32 %v31, %v136
    %v141 = vmul.f32 %v32, %v137
    %v142 = vmul.f32 %v33, %v138
    %v143 = vsub.f32 %v139, %v28
    %v144 = vsub.f32 %v140, %v28
    %v145 = vsub.f32 %v141, %v28
    %v146 = vsub.f32 %v142, %v28
    %v147 = vmul.f32 %v143, %v143
    %v148 = vmul.f32 %v144, %v144
    %v149 = vmul.f32 %v145, %v145
    %v150 = vmul.f32 %v146, %v146
    %v151 = vmul.f32 %v147, %v26
    %v152 = vmul.f32 %v148, %v26
    %v153 = vmul.f32 %v149, %v26
    %v154 = vmul.f32 %v150, %v26
    %v155 = vsel %vm50, %v151, 0.0
    %156 = vadd.xlane.f32.xlu0 %v155
    %v157 = vpop.xlane.xlu0 %156
    %v158 = vsel %vm50, %v152, 0.0
    %159 = vadd.xlane.f32.xlu0 %v158
    %v160 = vpop.xlane.xlu0 %159
    %v161 = vsel %vm50, %v153, 0.0
    %162 = vadd.xlane.f32.xlu0 %v161
    %v163 = vpop.xlane.xlu0 %162
    %v164 = vsel %vm50, %v154, 0.0
    %165 = vadd.xlane.f32.xlu0 %v164
    %v166 = vpop.xlane.xlu0 %165
    %v167 = vmul.f32 %v64, %v64
    %v168 = vmul.f32 %v65, %v65
    %v169 = vmul.f32 %v66, %v66
    %v170 = vmul.f32 %v67, %v67
    %v171 = vsub.f32 %v167, %v64
    %v172 = vsub.f32 %v168, %v65
    %v173 = vsub.f32 %v169, %v66
    %v174 = vsub.f32 %v170, %v67
    %v175 = vmul.f32 %v171, %v171
    %v176 = vmul.f32 %v172, %v172
    %v177 = vmul.f32 %v173, %v173
    %v178 = vmul.f32 %v174, %v174
    %v179 = vmul.f32 %v175, %v26
    %v180 = vmul.f32 %v176, %v26
    %v181 = vmul.f32 %v177, %v26
    %v182 = vmul.f32 %v178, %v26
    %v183 = vsel %vm50, %v179, 0.0
    %184 = vadd.xlane.f32.xlu0 %v183
    %v185 = vpop.xlane.xlu0 %184
    %v186 = vsel %vm50, %v180, 0.0
    %187 = vadd.xlane.f32.xlu0 %v186
    %v188 = vpop.xlane.xlu0 %187
    %v189 = vsel %vm50, %v181, 0.0
    %190 = vadd.xlane.f32.xlu0 %v189
    %v191 = vpop.xlane.xlu0 %190
    %v192 = vsel %vm50, %v182, 0.0
    %193 = vadd.xlane.f32.xlu0 %v192
    %v194 = vpop.xlane.xlu0 %193
    %v195 = vmul.f32 %v69, %v69
    %v196 = vmul.f32 %v70, %v70
    %v197 = vmul.f32 %v71, %v71
    %v198 = vmul.f32 %v72, %v72
    %v199 = vsub.f32 %v195, %v69
    %v200 = vsub.f32 %v196, %v70
    %v201 = vsub.f32 %v197, %v71
    %v202 = vsub.f32 %v198, %v72
    %v203 = vmul.f32 %v199, %v199
    %v204 = vmul.f32 %v200, %v200
    %v205 = vmul.f32 %v201, %v201
    %v206 = vmul.f32 %v202, %v202
    %v207 = vmul.f32 %v203, %v26
    %v208 = vmul.f32 %v204, %v26
    %v209 = vmul.f32 %v205, %v26
    %v210 = vmul.f32 %v206, %v26
    %v211 = vsel %vm50, %v207, 0.0
    %212 = vadd.xlane.f32.xlu0 %v211
    %v213 = vpop.xlane.xlu0 %212
    %v214 = vsel %vm50, %v208, 0.0
    %215 = vadd.xlane.f32.xlu0 %v214
    %v216 = vpop.xlane.xlu0 %215
    %v217 = vsel %vm50, %v209, 0.0
    %218 = vadd.xlane.f32.xlu0 %v217
    %v219 = vpop.xlane.xlu0 %218
    %v220 = vsel %vm50, %v210, 0.0
    %221 = vadd.xlane.f32.xlu0 %v220
    %v222 = vpop.xlane.xlu0 %221
    %s223 = scalar_lea.vmem [#allocation2], 160
    %v224 = vld [vmem:[%s223] sm:$0xff]
    %v225 = vld [vmem:[%s223 + $0x8] sm:$0xff]
    %v226 = vld [vmem:[%s223 + $0x10] sm:$0xff]
    %v227 = vld [vmem:[%s223 + $0x18] sm:$0xff]
    %v228 = vmul.f32 %v224, %v224
    %v229 = vmul.f32 %v225, %v225
    %v230 = vmul.f32 %v226, %v226
    %v231 = vmul.f32 %v227, %v227
    %v232 = vsub.f32 %v228, %v224
    %v233 = vsub.f32 %v229, %v225
    %v234 = vsub.f32 %v230, %v226
    %v235 = vsub.f32 %v231, %v227
    %v236 = vmul.f32 %v232, %v232
    %v237 = vmul.f32 %v233, %v233
    %v238 = vmul.f32 %v234, %v234
    %v239 = vmul.f32 %v235, %v235
    %v240 = vmul.f32 %v236, %v26
    %v241 = vmul.f32 %v237, %v26
    %v242 = vmul.f32 %v238, %v26
    %v243 = vmul.f32 %v239, %v26
    %v244 = vsel %vm50, %v240, 0.0
    %245 = vadd.xlane.f32.xlu0 %v244
    %v246 = vpop.xlane.xlu0 %245
    %v247 = vsel %vm50, %v241, 0.0
    %248 = vadd.xlane.f32.xlu0 %v247
    %v249 = vpop.xlane.xlu0 %248
    %v250 = vsel %vm50, %v242, 0.0
    %251 = vadd.xlane.f32.xlu0 %v250
    %v252 = vpop.xlane.xlu0 %251
    %v253 = vsel %vm50, %v243, 0.0
    %254 = vadd.xlane.f32.xlu0 %v253
    %v255 = vpop.xlane.xlu0 %254
    %v256 = vmul.f32 %v34, %v34
    %v257 = vmul.f32 %v35, %v35
    %v258 = vmul.f32 %v36, %v36
    %v259 = vmul.f32 %v37, %v37
    %v260 = vsub.f32 %v256, %v34
    %v261 = vsub.f32 %v257, %v35
    %v262 = vsub.f32 %v258, %v36
    %v263 = vsub.f32 %v259, %v37
    %v264 = vmul.f32 %v260, %v260
    %v265 = vmul.f32 %v261, %v261
    %v266 = vmul.f32 %v262, %v262
    %v267 = vmul.f32 %v263, %v263
    %v268 = vmul.f32 %v264, %v26
    %v269 = vmul.f32 %v265, %v26
    %v270 = vmul.f32 %v266, %v26
    %v271 = vmul.f32 %v267, %v26
    %v272 = vsel %vm50, %v268, 0.0
    %273 = vadd.xlane.f32.xlu0 %v272
    %v274 = vpop.xlane.xlu0 %273
    %v275 = vsel %vm50, %v269, 0.0
    %276 = vadd.xlane.f32.xlu0 %v275
    %v277 = vpop.xlane.xlu0 %276
    %v278 = vsel %vm50, %v270, 0.0
    %279 = vadd.xlane.f32.xlu0 %v278
    %v280 = vpop.xlane.xlu0 %279
    %v281 = vsel %vm50, %v271, 0.0
    %282 = vadd.xlane.f32.xlu0 %v281
    %v283 = vpop.xlane.xlu0 %282
    %v284 = vmul.f32 %v102, %v102
    %v285 = vmul.f32 %v103, %v103
    %v286 = vmul.f32 %v104, %v104
    %v287 = vmul.f32 %v105, %v105
    %v288 = vsub.f32 %v284, %v102
    %v289 = vsub.f32 %v285, %v103
    %v290 = vsub.f32 %v286, %v104
    %v291 = vsub.f32 %v287, %v105
    %v292 = vmul.f32 %v288, %v288
    %v293 = vmul.f32 %v289, %v289
    %v294 = vmul.f32 %v290, %v290
    %v295 = vmul.f32 %v291, %v291
    %v296 = vmul.f32 %v292, %v26
    %v297 = vmul.f32 %v293, %v26
    %v298 = vmul.f32 %v294, %v26
    %v299 = vmul.f32 %v295, %v26
    %v300 = vsel %vm50, %v296, 0.0
    %301 = vadd.xlane.f32.xlu0 %v300
    %v302 = vpop.xlane.xlu0 %301
    %v303 = vsel %vm50, %v297, 0.0
    %304 = vadd.xlane.f32.xlu0 %v303
    %v305 = vpop.xlane.xlu0 %304
    %v306 = vsel %vm50, %v298, 0.0
    %307 = vadd.xlane.f32.xlu0 %v306
    %v308 = vpop.xlane.xlu0 %307
    %v309 = vsel %vm50, %v299, 0.0
    %310 = vadd.xlane.f32.xlu0 %v309
    %v311 = vpop.xlane.xlu0 %310
    %s312 = scalar_lea.vmem [#allocation2], 64
    %v313 = vld [vmem:[%s312] sm:$0xff]
    %v314 = vld [vmem:[%s312 + $0x8] sm:$0xff]
    %v315 = vld [vmem:[%s312 + $0x10] sm:$0xff]
    %v316 = vld [vmem:[%s312 + $0x18] sm:$0xff]
    %v317 = vmul.f32 %v313, %v313
    %v318 = vmul.f32 %v314, %v314
    %v319 = vmul.f32 %v315, %v315
    %v320 = vmul.f32 %v316, %v316
    %v321 = vsub.f32 %v317, %v313
    %v322 = vsub.f32 %v318, %v314
    %v323 = vsub.f32 %v319, %v315
    %v324 = vsub.f32 %v320, %v316
    %v325 = vmul.f32 %v321, %v321
    %v326 = vmul.f32 %v322, %v322
    %v327 = vmul.f32 %v323, %v323
    %v328 = vmul.f32 %v324, %v324
    %v329 = vmul.f32 %v325, %v26
    %v330 = vmul.f32 %v326, %v26
    %v331 = vmul.f32 %v327, %v26
    %v332 = vmul.f32 %v328, %v26
    %v333 = vsel %vm50, %v329, 0.0
    %334 = vadd.xlane.f32.xlu0 %v333
    %v335 = vpop.xlane.xlu0 %334
    %v336 = vsel %vm50, %v330, 0.0
    %337 = vadd.xlane.f32.xlu0 %v336
    %v338 = vpop.xlane.xlu0 %337
    %v339 = vsel %vm50, %v331, 0.0
    %340 = vadd.xlane.f32.xlu0 %v339
    %v341 = vpop.xlane.xlu0 %340
    %v342 = vsel %vm50, %v332, 0.0
    %343 = vadd.xlane.f32.xlu0 %v342
    %v344 = vpop.xlane.xlu0 %343
    %vm345 = vcmask 7168
    %v346 = vsel %vm345, %v53, %v91
    %v347 = vsel %vm345, %v56, %v94
    %v348 = vsel %vm345, %v59, %v97
    %v349 = vsel %vm345, %v62, %v100
    %vm350 = vcmask 15360
    %v351 = vsel %vm350, %v346, %v124
    %v352 = vsel %vm350, %v347, %v127
    %v353 = vsel %vm350, %v348, %v130
    %v354 = vsel %vm350, %v349, %v133
    %vm355 = vcmask 23552
    %v356 = vsel %vm355, %v351, %v157
    %v357 = vsel %vm355, %v352, %v160
    %v358 = vsel %vm355, %v353, %v163
    %v359 = vsel %vm355, %v354, %v166
    %vm360 = vcmask 31744
    %v361 = vsel %vm360, %v356, %v185
    %v362 = vsel %vm360, %v357, %v188
    %v363 = vsel %vm360, %v358, %v191
    %v364 = vsel %vm360, %v359, %v194
    %vm365 = vcmask 39936
    %v366 = vsel %vm365, %v361, %v213
    %v367 = vsel %vm365, %v362, %v216
    %v368 = vsel %vm365, %v363, %v219
    %v369 = vsel %vm365, %v364, %v222
    %vm370 = vcmask 48128
    %v371 = vsel %vm370, %v366, %v246
    %v372 = vsel %vm370, %v367, %v249
    %v373 = vsel %vm370, %v368, %v252
    %v374 = vsel %vm370, %v369, %v255
    %vm375 = vcmask 56320
    %v376 = vsel %vm375, %v371, %v274
    %v377 = vsel %vm375, %v372, %v277
    %v378 = vsel %vm375, %v373, %v280
    %v379 = vsel %vm375, %v374, %v283
    %vm380 = vcmask 64512
    %v381 = vsel %vm380, %v376, %v302
    %v382 = vsel %vm380, %v377, %v305
    %v383 = vsel %vm380, %v378, %v308
    %v384 = vsel %vm380, %v379, %v311
    %vm385 = vcmask 72704
    %v386 = vsel %vm385, %v381, %v335
    %v387 = vsel %vm385, %v382, %v338
    %v388 = vsel %vm385, %v383, %v341
    %v389 = vsel %vm385, %v384, %v344
    %v390 = vrsqrt.pop %v386
    %v391 = vmul.f32 %v386, %v390
    %vm392 = vcmp.eq.f32.partialorder %v386, inf
    %v393 = vsel %vm392, %v386, %v391
    %vm394 = vcmp.eq.f32.partialorder %v386, 0.0
    %v395 = vand.u32 %v386, 2147483648
    %v396 = vsel %vm394, %v395, %v393
    %v397 = vrsqrt.pop %v387
    %v398 = vmul.f32 %v387, %v397
    %vm399 = vcmp.eq.f32.partialorder %v387, inf
    %v400 = vsel %vm399, %v387, %v398
    %vm401 = vcmp.eq.f32.partialorder %v387, 0.0
    %v402 = vand.u32 %v387, 2147483648
    %v403 = vsel %vm401, %v402, %v400
    %v404 = vrsqrt.pop %v388
    %v405 = vmul.f32 %v388, %v404
    %vm406 = vcmp.eq.f32.partialorder %v388, inf
    %v407 = vsel %vm406, %v388, %v405
    %vm408 = vcmp.eq.f32.partialorder %v388, 0.0
    %v409 = vand.u32 %v388, 2147483648
    %v410 = vsel %vm408, %v409, %v407
    %v411 = vrsqrt.pop %v389
    %v412 = vmul.f32 %v389, %v411
    %vm413 = vcmp.eq.f32.partialorder %v389, inf
    %v414 = vsel %vm413, %v389, %v412
    %vm415 = vcmp.eq.f32.partialorder %v389, 0.0
    %v416 = vand.u32 %v389, 2147483648
    %v417 = vsel %vm415, %v416, %v414
    %vm418 = vcmask 80896
    %v419 = vsel %vm418, %v396, -inf
    %v420 = vsel %vm418, %v403, -inf
    %v421 = vsel %vm418, %v410, -inf
    %v422 = vsel %vm418, %v417, -inf
    %v423 = vmax.f32 %v419, %v420
    %v424 = vmax.f32 %v421, %v422
    %v425 = vmax.f32 %v423, %v424
    %v426 = vrot.slane %v425, 4
    %v427 = vmax.f32 %v425, %v426
    %v428 = vrot.slane %v427, 2
    %v429 = vmax.f32 %v427, %v428
    %v430 = vrot.slane %v429, 1
    %v431 = vmax.f32 %v429, %v430
    %v432 = vsel %vm418, %v396, inf
    %v433 = vsel %vm418, %v403, inf
    %v434 = vsel %vm418, %v410, inf
    %v435 = vsel %vm418, %v417, inf
    %v436 = vmin.f32 %v432, %v433
    %v437 = vmin.f32 %v434, %v435
    %v438 = vmin.f32 %v436, %v437
    %v439 = vrot.slane %v438, 4
    %v440 = vmin.f32 %v438, %v439
    %v441 = vrot.slane %v440, 2
    %v442 = vmin.f32 %v440, %v441
    %v443 = vrot.slane %v442, 1
    %v444 = vmin.f32 %v442, %v443
    %v445 = vsel %vm418, %v396, 0.0
    %v446 = vsel %vm418, %v403, 0.0
    %v447 = vadd.f32 %v445, %v446
    %v448 = vsel %vm418, %v410, 0.0
    %v449 = vadd.f32 %v447, %v448
    %v450 = vsel %vm418, %v417, 0.0
    %v451 = vadd.f32 %v449, %v450
    %v452 = vrot.slane %v451, 4
    %v453 = vadd.f32 %v451, %v452
    %v454 = vrot.slane %v453, 2
    %v455 = vadd.f32 %v453, %v454
    %v456 = vrot.slane %v455, 1
    %v457 = vadd.f32 %v455, %v456
    %v458 = vrcp.pop 32.0
    %v459 = vmul.f32 %v457, %v458
    %v460 = vsub.f32 %v431, %v459
    %v461 = vsub.f32 %v431, %v444
    %v462 = vrcp.pop %v461
    %v463 = vmul.f32 %v460, %v462
    %v464 = vadd.f32 %v463, 5e-05
    %v465 = vlog2.pop %v464
    %v466 = vmul.f32 %v465, 0.6931472
    %v467 = vsel %vm418, %v466, 0.0
    %468 = vadd.xlane.f32.xlu0 %v467
    %v469 = vpop.xlane.xlu0 %468
    %v470 = vmul.f32 %v469, -0.5
    %v471 = vxor.u32 %v470, 2147483648
    %v472 = vmul.f32 %v471, 1.442695
    %v473 = vpow.pop %v472
    %v474 = vadd.f32 %v473, 1.0
    %v475 = vrcp.pop %v474
    %v476 = vmul.f32 1.0, %v475
    %vm477 = vcmask 0
    %478 = vst.msk [vmem:[#allocation5] sm:$0x1] %vm477, %v476
    // Predicated region
    $region10: #{tpu_custom_call.1} parent=1 // pred_check
      _
    $region11: #{tpu_custom_call.1} parent=1 // pred_check_branch
      %480 = sbr.rel (0) target = $region13
    $region12: #{tpu_custom_call.1} parent=1 // pred_region
      %s482 = ssub.s32 16, 16
      %483 = vsyncadd [#allocation4], %s482
      %s485 = sshll.u32 [#allocation5], 4
      %s486 = int_to_ptr.vmem [resolvable:$true] %s485
      %488 = dma.vmem_to_hbm [thread:$0]  %s486, 16, %s1, [#allocation4]
    $region13: #{tpu_custom_call.1} parent=1 // pred_fallthru
      _
    // Predicated region
    $region14: #{tpu_custom_call.1} parent=1 // pred_check
      _
    $region15: #{tpu_custom_call.1} parent=1 // pred_check_branch
      %490 = sbr.rel (0) target = $region17
    $region16: #{tpu_custom_call.1} parent=1 // pred_region
      %491 = dma.done [#allocation4], 16
    $region17: #{tpu_custom_call.1} parent=1 // pred_fallthru
      _
    %492 = vsyncpa [#allocation3], 1
    %493 = vsyncpa [#allocation4], 1

</llo_original>
